<compile_context>
chip_gen: v7x
topology: tpu7x:2x2x1
jax: 0.10.0
libtpu: 0.0.40
codegen_flags: <defaults>
</compile_context>

<pallas_src>
import functools
import math

import jax
import jax.numpy as jnp
from jax import lax
from jax.experimental import pallas as pl
from jax.experimental.pallas import tpu as pltpu


# above default scoped limit (16/32 MiB), below v7x's 64 MiB physical VMEM
_VMEM_LIMIT_BYTES = 56 * 1024 * 1024


# ---------------------------------------------------------------------------
# helpers
# ---------------------------------------------------------------------------
def _round_up(a, m):
    return ((a + m - 1) // m) * m


def _layer_norm(x, g, b, eps=1e-5):
    mu = jnp.mean(x, axis=-1, keepdims=True)
    var = jnp.mean(jnp.square(x - mu), axis=-1, keepdims=True)
    return (x - mu) * lax.rsqrt(var + eps) * g + b


def _rep_spec(arr):
    """Replicated (grid-invariant) weight BlockSpec.

    Grid-invariant weights do not need double buffering; request a single
    buffer when the installed Pallas supports per-BlockSpec pipeline_mode
    (frees VMEM for larger q/k tiles, especially on v7x)."""
    zero = (0,) * arr.ndim
    idx = lambda *_ignored, _z=zero: _z
    try:
        return pl.BlockSpec(arr.shape, idx, pipeline_mode=pl.Buffered(1))
    except (TypeError, AttributeError):
        return pl.BlockSpec(arr.shape, idx)


def _plan_tiles(l_valid, tile_q=None, tile_k=None):
    """Pick (tq, tk, padded_len).  tq is raised with problem size (arithmetic
    intensity of the kv stream ~ tq FLOP/byte); tk stays a multiple of 128
    (lane constraint) and both divide the padded token length."""
    if tile_q is None:
        if l_valid >= 1536:
            tile_q = 512
        elif l_valid >= 384:
            tile_q = 256
        elif l_valid >= 96:
            tile_q = 128
        else:
            tile_q = max(8, _round_up(l_valid, 8))
    if tile_k is None:
        tile_k = min(256, tile_q)
    step = (tile_q * tile_k) // math.gcd(tile_q, tile_k)
    l_pad = _round_up(l_valid, step)
    return tile_q, tile_k, l_pad


def _triangular_flat_indices(seq, padded_len):
    """Flat (start*seq+end) indices of valid spans, start-major, padded."""
    idx = [s * seq + e for s in range(seq) for e in range(s, seq)]
    idx += [0] * (padded_len - len(idx))
    return jnp.asarray(idx, dtype=jnp.int32)


def _compact_span_index(start, end, seq):
    start = start.astype(jnp.int32)
    end = end.astype(jnp.int32)
    offset = start * seq - (start * (start - 1)) // 2
    return offset + (end - start)


# ---------------------------------------------------------------------------
# Span representation (method == 'max') via descending-start recurrence.
#   span[s, e, :] = max(x[s, :], span[s+1, e, :])
# grid = (bsz, hd-chunks [parallel], start-chunks [arbitrary, descending]);
# each grid step handles `cs` consecutive starts with an inner fori_loop and
# a (seq, hc) f32 scratch carrying the running maxima.
# ---------------------------------------------------------------------------
def _span_max_kernel(seq, cs, x_ref, o_ref, cur_ref):
    ci = pl.program_id(2)
    n_chunks = pl.num_programs(2)

    @pl.when(ci == 0)
    def _():
        cur_ref[...] = jnp.full(cur_ref.shape, -jnp.inf, jnp.float32)

    base = (n_chunks - 1 - ci) * cs          # global start of this chunk
    e_idx = lax.broadcasted_iota(jnp.int32, (seq, 1), 0)

    def body(i, carry):
        r = cs - 1 - i                       # process starts descending
        s = base + r
        x_s = x_ref[0, pl.ds(s, 1), :].astype(jnp.float32)        # (1, hc)
        prev = jnp.where(e_idx > s, cur_ref[...], -jnp.inf)
        cur = jnp.maximum(prev, x_s)                              # max x[s..e]
        cur_ref[...] = cur
        o_ref[0, pl.ds(r, 1), :, :] = (
            jnp.where(e_idx >= s, cur, 0.0)[None].astype(o_ref.dtype))
        return carry

    lax.fori_loop(0, cs, body, 0, unroll=(cs <= 8))


def span_repr_max(x, out_dtype=jnp.bfloat16):
    bsz, seq, hd = x.shape
    # feature-chunk axis: lets two TensorCores (v7x) split the span phase
    hc = 128 if (hd % 128 == 0 and hd >= 256) else hd
    n_hc = hd // hc
    # starts per grid step: largest divisor of seq whose out block is <= ~2 MiB
    budget = 2 * 1024 * 1024
    cs = 1
    for c in range(seq, 0, -1):
        if seq % c == 0 and c * seq * hc * 2 <= budget:
            cs = c
            break
    n_sc = seq // cs
    return pl.pallas_call(
        functools.partial(_span_max_kernel, seq, cs),
        out_shape=jax.ShapeDtypeStruct((bsz, seq, seq, hd), out_dtype),
        grid=(bsz, n_hc, n_sc),
        in_specs=[pl.BlockSpec((1, seq, hc), lambda b, c, ci: (b, 0, c))],
        out_specs=pl.BlockSpec(
            (1, cs, seq, hc),
            lambda b, c, ci, _n=n_sc: (b, _n - 1 - ci, 0, c)),
        scratch_shapes=[pltpu.VMEM((seq, hc), jnp.float32)],
        compiler_params=pltpu.CompilerParams(
            dimension_semantics=("parallel", "parallel", "arbitrary")),
    )(x)


# ---------------------------------------------------------------------------
# Per-layer kernel 1: sequence-tiled QKV projection.
#   q, v head-major (b, nhead, L, hdim); K written TRANSPOSED as
#   (b, nhead, hdim, L) so its store (and the attention matmul operand) is
#   lane-dense along the token axis.  The 1/sqrt(hdim) q scale is already
#   folded into wqkv/bqkv at init time.
# ---------------------------------------------------------------------------
def _qkv_proj_kernel(nhead, x_ref, wqkv_ref, bqkv_ref, q_ref, k_ref, v_ref):
    x = x_ref[0]                                           # (tq, d) bf16
    d = x.shape[1]
    hdim = d // nhead
    qkv = jnp.dot(x, wqkv_ref[...],
                  preferred_element_type=jnp.float32) + bqkv_ref[...]
    # NOTE: for hdim < 128 these per-head stores are narrower than a lane
    # tile; with the module defaults (proj_dim=256, nhead=2 -> hdim=128) they
    # are lane-dense.
    for h in range(nhead):                                 # static, small
        lo = h * hdim
        q_ref[0, h] = qkv[:, lo:lo + hdim].astype(q_ref.dtype)
        k_ref[0, h] = qkv[:, d + lo:d + lo + hdim].T.astype(k_ref.dtype)
        v_ref[0, h] = qkv[:, 2 * d + lo:2 * d + lo + hdim].astype(v_ref.dtype)


def qkv_proj(x, wqkv, bqkv, nhead, tq):
    bsz, l_pad, d = x.shape
    hdim = d // nhead
    q_sds = jax.ShapeDtypeStruct((bsz, nhead, l_pad, hdim), jnp.bfloat16)
    kT_sds = jax.ShapeDtypeStruct((bsz, nhead, hdim, l_pad), jnp.bfloat16)
    q_spec = pl.BlockSpec((1, nhead, tq, hdim), lambda b, i: (b, 0, i, 0))
    kT_spec = pl.BlockSpec((1, nhead, hdim, tq), lambda b, i: (b, 0, 0, i))
    return pl.pallas_call(
        functools.partial(_qkv_proj_kernel, nhead),
        out_shape=(q_sds, kT_sds, q_sds),
        grid=(bsz, l_pad // tq),
        in_specs=[pl.BlockSpec((1, tq, d), lambda b, i: (b, i, 0)),
                  _rep_spec(wqkv), _rep_spec(bqkv)],
        out_specs=(q_spec, kT_spec, q_spec),
        compiler_params=pltpu.CompilerParams(
            dimension_semantics=("parallel", "parallel"),
            vmem_limit_bytes=_VMEM_LIMIT_BYTES),
    )(x, wqkv, bqkv)


# ---------------------------------------------------------------------------
# Per-layer kernel 2: flash attention (online softmax over kv tiles) fused
# with per-head output projection + residual + LN1 + FFN + residual + LN2.
# Compact token layout -> only padding keys (j >= l_valid) need masking, and
# kv tiles that are entirely padding are skipped.
# ---------------------------------------------------------------------------
def _attn_ffn_kernel(nhead, l_valid, tk,
                     x_ref, q_ref, k_ref, v_ref,
                     wo_ref, bo_ref, w1_ref, b1_ref, w2_ref, b2_ref,
                     g1_ref, be1_ref, g2_ref, be2_ref,
                     o_ref, m_sc, l_sc, acc_sc):
    ki = pl.program_id(2)

    @pl.when(ki == 0)
    def _():
        m_sc[...] = jnp.full(m_sc.shape, -jnp.inf, jnp.float32)
        l_sc[...] = jnp.zeros(l_sc.shape, jnp.float32)
        acc_sc[...] = jnp.zeros(acc_sc.shape, jnp.float32)

    @pl.when(ki * tk < l_valid)          # skip fully-padded kv tiles
    def _():
        q = q_ref[0]                     # (nhead, tq, hdim)  bf16
        kT = k_ref[0]                    # (nhead, hdim, tk)  bf16 (pre-transposed)
        v = v_ref[0]                     # (nhead, tk, hdim)  bf16
        scores = jnp.einsum('hqd,hdk->hqk', q, kT,
                            preferred_element_type=jnp.float32)
        # mask padding keys (token index >= l_valid), generated from iota
        j = ki * tk + lax.broadcasted_iota(jnp.int32, (1, 1, tk), 2)
        scores = jnp.where(j < l_valid, scores, jnp.float32(-1e30))

        m_prev = m_sc[...]
        m_new = jnp.maximum(m_prev, jnp.max(scores, axis=-1, keepdims=True))
        alpha = jnp.exp(m_prev - m_new)
        p = jnp.exp(scores - m_new)
        l_sc[...] = alpha * l_sc[...] + jnp.sum(p, axis=-1, keepdims=True)
        acc_sc[...] = alpha * acc_sc[...] + jnp.einsum(
            'hqk,hkd->hqd', p.astype(v.dtype), v,
            preferred_element_type=jnp.float32)
        m_sc[...] = m_new

    @pl.when(ki == pl.num_programs(2) - 1)
    def _():
        ctx = (acc_sc[...] * pl.reciprocal(l_sc[...], approx=True)
               ).astype(jnp.bfloat16)                       # (nhead, tq, hdim)
        # per-head contraction against wo (nhead, hdim, d): no lane-axis concat
        attn = jnp.dot(ctx[0], wo_ref[0], preferred_element_type=jnp.float32)
        for h in range(1, nhead):
            attn = attn + jnp.dot(ctx[h], wo_ref[h],
                                  preferred_element_type=jnp.float32)
        attn = attn + bo_ref[...]
        x0 = x_ref[0].astype(jnp.float32)
        x1 = _layer_norm(x0 + attn, g1_ref[...], be1_ref[...])
        h1 = jnp.maximum(
            jnp.dot(x1.astype(jnp.bfloat16), w1_ref[...],
                    preferred_element_type=jnp.float32) + b1_ref[...], 0.0)
        ffn = jnp.dot(h1.astype(jnp.bfloat16), w2_ref[...],
                      preferred_element_type=jnp.float32) + b2_ref[...]
        x2 = _layer_norm(x1 + ffn, g2_ref[...], be2_ref[...])
        o_ref[0] = x2.astype(o_ref.dtype)


def attn_ffn_layer(x, q, kT, v, p, nhead, l_valid, tq, tk):
    bsz, l_pad, d = x.shape
    hdim = d // nhead
    w_names = ("wo", "bo", "w1", "b1", "w2", "b2", "g1", "be1", "g2", "be2")
    weights = [p[n] for n in w_names]
    in_specs = ([pl.BlockSpec((1, tq, d), lambda b, qi, ki: (b, qi, 0)),
                 pl.BlockSpec((1, nhead, tq, hdim),
                              lambda b, qi, ki: (b, 0, qi, 0)),
                 pl.BlockSpec((1, nhead, hdim, tk),
                              lambda b, qi, ki: (b, 0, 0, ki)),
                 pl.BlockSpec((1, nhead, tk, hdim),
                              lambda b, qi, ki: (b, 0, ki, 0))]
                + [_rep_spec(w) for w in weights])
    return pl.pallas_call(
        functools.partial(_attn_ffn_kernel, nhead, l_valid, tk),
        out_shape=jax.ShapeDtypeStruct((bsz, l_pad, d), jnp.bfloat16),
        grid=(bsz, l_pad // tq, l_pad // tk),
        in_specs=in_specs,
        out_specs=pl.BlockSpec((1, tq, d), lambda b, qi, ki: (b, qi, 0)),
        scratch_shapes=[pltpu.VMEM((nhead, tq, 1), jnp.float32),
                        pltpu.VMEM((nhead, tq, 1), jnp.float32),
                        pltpu.VMEM((nhead, tq, hdim), jnp.float32)],
        compiler_params=pltpu.CompilerParams(
            dimension_semantics=("parallel", "parallel", "arbitrary"),
            vmem_limit_bytes=_VMEM_LIMIT_BYTES),
    )(x, q, kT, v, *weights)


# ---------------------------------------------------------------------------
# Final encoder LayerNorm applied only to the gathered query rows
# (LayerNorm is per-row, so this is mathematically identical).
# ---------------------------------------------------------------------------
def _rows_norm_kernel(x_ref, g_ref, b_ref, o_ref):
    o_ref[...] = _layer_norm(x_ref[...].astype(jnp.float32),
                             g_ref[...], b_ref[...]).astype(o_ref.dtype)


def final_norm_rows(x, g, b):
    n, d = x.shape
    return pl.pallas_call(
        _rows_norm_kernel,
        out_shape=jax.ShapeDtypeStruct((n, d), jnp.float32),
    )(x, g, b)


# ---------------------------------------------------------------------------
# Module wrapper
# ---------------------------------------------------------------------------
class FullyConnectSpanReprPallas:
    """Pallas/TPU port of FullyConnectSpanRepr (ComplexSpanRepr subclass),
    method='max', eval mode (dropout layers are identity)."""

    def __init__(self, method, input_dim, use_proj=False, proj_dim=256,
                 attn_schema=('none',), nhead=2, nlayer=2,
                 dim_feedforward=2048, seed=0):
        if method != "max":
            # TODO(synk): only method='max' is ported; 'mean'/'endpoint'/
            # 'diff_sum'/'attn' span constructions are not implemented here.
            raise NotImplementedError(method)
        self.method = method
        self.input_dim = input_dim
        self.use_proj = use_proj
        self.attn_schema = attn_schema
        self.nhead = nhead
        self.nlayer = nlayer
        d = proj_dim if use_proj else input_dim
        self.output_dim = d
        hdim = d // nhead

        def normal(k, shape, scale=0.02):
            return (scale * jax.random.normal(k, shape)).astype(jnp.float32)

        keys = list(jax.random.split(jax.random.PRNGKey(seed), 1 + 4 * nlayer))
        kit = iter(keys)

        if use_proj:
            self.proj_w = normal(next(kit), (input_dim, proj_dim))
            self.proj_b = jnp.zeros((proj_dim,), jnp.float32)
        else:
            next(kit)

        q_scale = 1.0 / math.sqrt(hdim)
        bf16 = jnp.bfloat16
        self.layers = []
        for _ in range(nlayer):
            wqkv = normal(next(kit), (d, 3 * d))
            # fold the 1/sqrt(hdim) attention scale into the q columns
            wqkv = wqkv.at[:, :d].multiply(q_scale)
            bqkv = jnp.zeros((1, 3 * d), jnp.float32)
            bqkv = bqkv.at[:, :d].multiply(q_scale)
            # store wo per-head: (nhead, hdim, d)
            wo = normal(next(kit), (d, d)).reshape(nhead, hdim, d)
            self.layers.append(dict(
                wqkv=wqkv.astype(bf16),
                bqkv=bqkv,
                wo=wo.astype(bf16),
                bo=jnp.zeros((1, d), jnp.float32),
                w1=normal(next(kit), (d, dim_feedforward)).astype(bf16),
                b1=jnp.zeros((1, dim_feedforward), jnp.float32),
                w2=normal(next(kit), (dim_feedforward, d)).astype(bf16),
                b2=jnp.zeros((1, d), jnp.float32),
                g1=jnp.ones((1, d), jnp.float32),
                be1=jnp.zeros((1, d), jnp.float32),
                g2=jnp.ones((1, d), jnp.float32),
                be2=jnp.zeros((1, d), jnp.float32),
            ))
        self.gf = jnp.ones((1, d), jnp.float32)
        self.bf = jnp.zeros((1, d), jnp.float32)

    def __call__(self, encoded_input, start_ids_1, end_ids_1, query_batch_idx,
                 start_ids_2=None, end_ids_2=None, tile_q=None, tile_k=None):
        x = encoded_input.astype(jnp.float32)
        if self.use_proj:
            x = jnp.dot(x, self.proj_w) + self.proj_b               # glue
        bsz, seq, d = x.shape

        # Triangular compaction: only valid spans (end >= start) are tokens.
        n_valid = seq * (seq + 1) // 2
        tq, tk, l_pad = _plan_tiles(n_valid, tile_q, tile_k)
        assert tq % 8 == 0 and l_pad % tq == 0 and l_pad % tk == 0
        assert tk % 128 == 0 or tk == l_pad   # lane constraint on K tiles

        # span construction (O(seq^2 * d) recurrence), stored bf16
        span = span_repr_max(x)                                     # (b,s,e,d)
        flat_idx = _triangular_flat_indices(seq, l_pad)
        h = span.reshape(bsz, seq * seq, d)[:, flat_idx]            # glue gather

        # transformer encoder: per layer, tiled QKV projection + fused
        # flash-attention / out-proj / LN / FFN / LN kernel.
        for p in self.layers:
            q, kT, v = qkv_proj(h, p["wqkv"], p["bqkv"], self.nhead, tq)
            h = attn_ffn_layer(h, q, kT, v, p, self.nhead, n_valid, tq, tk)

        # gather requested spans, final LayerNorm on gathered rows only.
        qb = jnp.asarray(query_batch_idx)
        idx1 = _compact_span_index(jnp.asarray(start_ids_1),
                                   jnp.asarray(end_ids_1), seq)
        res1 = final_norm_rows(h[qb, idx1], self.gf, self.bf)
        if start_ids_2 is None:
            return res1, None
        idx2 = _compact_span_index(jnp.asarray(start_ids_2),
                                   jnp.asarray(end_ids_2), seq)
        res2 = final_norm_rows(h[qb, idx2], self.gf, self.bf)
        return res1, res2

    def get_input_dim(self):
        return self.input_dim

    def get_output_dim(self):
        return self.output_dim


# ---------------------------------------------------------------------------
# Pure-JAX f32 reference (same weights, full seq^2 layout with key-padding
# mask) for validation.  The 1/sqrt(hdim) scale is already folded into wqkv.
# ---------------------------------------------------------------------------
def reference_forward(model, encoded, s1, e1, qb, s2=None, e2=None):
    x = encoded.astype(jnp.float32)
    if model.use_proj:
        x = jnp.dot(x, model.proj_w) + model.proj_b
    bsz, seq, d = x.shape
    L = seq * seq
    nh = model.nhead
    hd = d // nh

    sA = jnp.arange(seq)[:, None, None]
    eA = jnp.arange(seq)[None, :, None]
    tA = jnp.arange(seq)[None, None, :]
    in_span = (tA >= sA) & (tA <= eA)                              # (s,e,t)
    vals = jnp.where(in_span[None, :, :, :, None],
                     x[:, None, None, :, :], -jnp.inf)
    span = jnp.max(vals, axis=3)                                   # (b,s,e,d)
    span = jnp.where((eA >= sA)[None], span, 0.0)
    h = span.reshape(bsz, L, d)

    key = jnp.arange(L)
    bias = jnp.where((key % seq) < (key // seq), -1e30, 0.0).astype(jnp.float32)

    for p in model.layers:
        qkv = h @ p["wqkv"].astype(jnp.float32) + p["bqkv"]
        q, k, v = qkv[..., :d], qkv[..., d:2 * d], qkv[..., 2 * d:]
        sh = lambda t: t.reshape(bsz, L, nh, hd).transpose(0, 2, 1, 3)
        qh = sh(q)                         # scale pre-folded into wqkv
        kh, vh = sh(k), sh(v)
        scores = jnp.einsum("bhqe,bhke->bhqk", qh, kh) + bias[None, None, None, :]
        w = jax.nn.softmax(scores, axis=-1)
        ctx = jnp.einsum("bhqk,bhke->bhqe", w, vh)
        ctx = ctx.transpose(0, 2, 1, 3).reshape(bsz, L, d)
        wo2d = p["wo"].reshape(d, d).astype(jnp.float32)
        attn = ctx @ wo2d + p["bo"]
        x1 = _layer_norm(h + attn, p["g1"], p["be1"])
        ffn = (jnp.maximum(x1 @ p["w1"].astype(jnp.float32) + p["b1"], 0.0)
               @ p["w2"].astype(jnp.float32) + p["b2"])
        h = _layer_norm(x1 + ffn, p["g2"], p["be2"])

    h = _layer_norm(h, model.gf, model.bf)
    r1 = h[qb, s1 * seq + e1]
    if s2 is None:
        return r1, None
    return r1, h[qb, s2 * seq + e2]


if __name__ == "__main__":
    bsz, seq, hidden = 2, 16, 32
    model = FullyConnectSpanReprPallas("max", hidden, use_proj=False,
                                       nhead=2, nlayer=2, dim_feedforward=64,
                                       seed=0)

    key = jax.random.PRNGKey(0)
    encoded = jax.random.normal(key, (bsz, seq, hidden), dtype=jnp.float32)
    query_batch_idx = jnp.array([0, 0, 1, 1], dtype=jnp.int32)
    start_ids_1 = jnp.array([0, 2, 1, 3], dtype=jnp.int32)
    end_ids_1 = jnp.array([3, 5, 4, 15], dtype=jnp.int32)
    start_ids_2 = jnp.array([1, 0, 2, 5], dtype=jnp.int32)
    end_ids_2 = jnp.array([6, 2, 15, 6], dtype=jnp.int32)

    # seq=16 -> 136 valid spans, padded to 256 with tq=tk=128: exercises
    # multiple q/kv tiles, online softmax carry and padding-key masking.
    res1, res2 = model(encoded, start_ids_1, end_ids_1, query_batch_idx,
                       start_ids_2, end_ids_2)
    res1, res2 = jax.block_until_ready((res1, res2))

    assert res1.shape == (4, hidden) and res2.shape == (4, hidden)
    assert bool(jnp.all(jnp.isfinite(res1))) and bool(jnp.all(jnp.isfinite(res2)))

    ref1, ref2 = reference_forward(model, encoded, start_ids_1, end_ids_1,
                                   query_batch_idx, start_ids_2, end_ids_2)
    err = max(float(jnp.max(jnp.abs(res1 - ref1))),
              float(jnp.max(jnp.abs(res2 - ref2))))
    assert err < 0.15, f"max abs err vs f32 reference: {err}"
    print("KERNEL_OK")
</pallas_src>

<mosaic_0001>
module attributes {stable_mosaic.version = 11 : i64} {
  func.func @_span_max_kernel(%arg0: i32, %arg1: i32, %arg2: i32, %arg3: memref<1x16x32xf32, #tpu.memory_space<vmem>>, %arg4: memref<1x16x16x32xbf16, #tpu.memory_space<vmem>>, %arg5: memref<16x32xf32, #tpu.memory_space<vmem>>) attributes {dimension_semantics = [#tpu.dimension_semantics<parallel>, #tpu.dimension_semantics<parallel>, #tpu.dimension_semantics<arbitrary>], iteration_bounds = array<i64: 2, 1, 1>, scalar_prefetch = 0 : i64, scratch_operands = 1 : i64, tpu.core_type = #tpu.core_type<tc>, window_params = [{transform_indices = @transform_0, window_bounds = array<i64: 1, 16, 32>}, {transform_indices = @transform_1, window_bounds = array<i64: 1, 16, 16, 32>}]} {
    %c0_i32 = arith.constant 0 : i32
    %0 = arith.cmpi eq, %arg2, %c0_i32 : i32
    %1 = arith.extui %0 : i1 to i32
    %c0_i32_0 = arith.constant 0 : i32
    %2 = arith.cmpi ne, %1, %c0_i32_0 : i32
    scf.if %2 {
      %cst = arith.constant 0xFF800000 : f32
      %7 = vector.broadcast %cst : f32 to vector<16x32xf32>
      %c0 = arith.constant 0 : index
      %c0_5 = arith.constant 0 : index
      %8 = vector.load %arg5[%c0, %c0_5] : memref<16x32xf32, #tpu.memory_space<vmem>>, vector<16x32xf32>
      tpu.vector_store %arg5[%c0, %c0_5], %7 {strides = array<i32>} : memref<16x32xf32, #tpu.memory_space<vmem>>, vector<16x32xf32>,
    } else {
    }
    %c0_i32_1 = arith.constant 0 : i32
    %3 = arith.subi %c0_i32_1, %arg2 : i32
    %c16_i32 = arith.constant 16 : i32
    %4 = arith.muli %3, %c16_i32 : i32
    %5 = tpu.iota {dimensions = array<i32: 0>} : vector<16x1xi32>
    %c0_i32_2 = arith.constant 0 : i32
    %c16_i32_3 = arith.constant 16 : i32
    %6 = arith.addi %c0_i32_2, %c16_i32_3 : i32
    %c1_i32 = arith.constant 1 : i32
    scf.for %arg6 = %c0_i32_2 to %6 step %c1_i32  : i32 {
      %c15_i32 = arith.constant 15 : i32
      %7 = arith.subi %c15_i32, %arg6 : i32
      %8 = arith.addi %4, %7 : i32
      %c0 = arith.constant 0 : index
      %9 = arith.index_cast %8 : i32 to index
      %c0_5 = arith.constant 0 : index
      %10 = vector.load %arg3[%c0, %9, %c0_5] : memref<1x16x32xf32, #tpu.memory_space<vmem>>, vector<1x1x32xf32>
      %11 = vector.shape_cast %10 : vector<1x1x32xf32> to vector<1x32xf32>
      %12 = vector.broadcast %8 : i32 to vector<16x1xi32>
      %13 = arith.cmpi sgt, %5, %12 : vector<16x1xi32>
      %c0_6 = arith.constant 0 : index
      %c0_7 = arith.constant 0 : index
      %14 = vector.load %arg5[%c0_6, %c0_7] : memref<16x32xf32, #tpu.memory_space<vmem>>, vector<16x32xf32>
      %cst = arith.constant 0xFF800000 : f32
      %15 = vector.shape_cast %13 : vector<16x1xi1> to vector<16x1xi1>
      %16 = vector.broadcast %15 : vector<16x1xi1> to vector<16x32xi1>
      %17 = vector.broadcast %cst : f32 to vector<16x32xf32>
      %18 = arith.select %16, %14, %17 : vector<16x32xi1>, vector<16x32xf32>
      %19 = vector.broadcast %11 : vector<1x32xf32> to vector<16x32xf32>
      %20 = arith.maximumf %18, %19 : vector<16x32xf32>
      %c0_8 = arith.constant 0 : index
      %c0_9 = arith.constant 0 : index
      %21 = vector.load %arg5[%c0_8, %c0_9] : memref<16x32xf32, #tpu.memory_space<vmem>>, vector<16x32xf32>
      tpu.vector_store %arg5[%c0_8, %c0_9], %20 {strides = array<i32>} : memref<16x32xf32, #tpu.memory_space<vmem>>, vector<16x32xf32>,
      %22 = vector.broadcast %8 : i32 to vector<16x1xi32>
      %23 = arith.cmpi sge, %5, %22 : vector<16x1xi32>
      %cst_10 = arith.constant 0.000000e+00 : f32
      %24 = vector.shape_cast %23 : vector<16x1xi1> to vector<16x1xi1>
      %25 = vector.broadcast %24 : vector<16x1xi1> to vector<16x32xi1>
      %26 = vector.broadcast %cst_10 : f32 to vector<16x32xf32>
      %27 = arith.select %25, %20, %26 : vector<16x32xi1>, vector<16x32xf32>
      %28 = vector.shape_cast %27 : vector<16x32xf32> to vector<1x16x32xf32>
      %29 = arith.truncf %28 : vector<1x16x32xf32> to vector<1x16x32xbf16>
      %c0_11 = arith.constant 0 : index
      %30 = arith.index_cast %7 : i32 to index
      %c0_12 = arith.constant 0 : index
      %c0_13 = arith.constant 0 : index
      %31 = vector.load %arg4[%c0_11, %30, %c0_12, %c0_13] : memref<1x16x16x32xbf16, #tpu.memory_space<vmem>>, vector<1x1x16x32xbf16>
      %32 = vector.shape_cast %31 : vector<1x1x16x32xbf16> to vector<1x16x32xbf16>
      %33 = vector.shape_cast %29 : vector<1x16x32xbf16> to vector<1x1x16x32xbf16>
      tpu.vector_store %arg4[%c0_11, %30, %c0_12, %c0_13], %33 {strides = array<i32>} : memref<1x16x16x32xbf16, #tpu.memory_space<vmem>>, vector<1x1x16x32xbf16>,
    }
    %c16_i32_4 = arith.constant 16 : i32
    return
  }
  func.func @transform_0(%arg0: i32, %arg1: i32, %arg2: i32) -> (i32, i32, i32) {
    %c0_i32 = arith.constant 0 : i32
    %c0_i32_0 = arith.constant 0 : i32
    return %arg0, %c0_i32, %arg1 : i32, i32, i32
  }
  func.func @transform_1(%arg0: i32, %arg1: i32, %arg2: i32) -> (i32, i32, i32, i32) {
    %c0_i32 = arith.constant 0 : i32
    %0 = arith.subi %c0_i32, %arg2 : i32
    %c0_i32_0 = arith.constant 0 : i32
    %c0_i32_1 = arith.constant 0 : i32
    return %arg0, %0, %c0_i32_0, %arg1 : i32, i32, i32, i32
  }
}

</mosaic_0001>

<llo_original>
// kernel: tpu_custom_call.1
$region0: #{tpu_custom_call.1}
  #allocation0 [shape = 'u32[]', space=smem, size = 0x4, offset = 0x4, fixed_abs, tag = 'smem constant byte address 0x4 - core index']
  #allocation1 [shape = 'u32[144,128]{1,0:T(1,128)}', space=vmem, size = 0x12000, scoped, tag = 'internal scratch']
  #allocation2 [shape = 'f32[16,32]{1,0:T(8,128)}', space=vmem, size = 0x2000, scoped, tag = 'scratch operand']
  %s0 = inlined_call_operand.hbm [shape: f32[2,16,32], index: 0, kind: input, shape index: {}]
  %s1 = inlined_call_operand.hbm [shape: bf16[2,16,16,32], index: 1, kind: output, shape index: {}]
  %s2 = sld [smem:[#allocation0]]
  $region52: #{tpu_custom_call.1} parent=0
    _
  %s4 = ssub.s32 1, %s2
  %s5 = scalar_select 0, %s4, %s2
  $region1: #{tpu_custom_call.1} parent=0
    #allocation3 [shape = 'u8[16384]{0}', space=vmem, size = 0x4000, scoped, tag = 'input window, operand 0']
    #allocation4 [shape = 's32[2]{0}', space=sflag, size = 0x8, scoped, tag = 'scoped memory for tpu_custom_call.1']
    #allocation5 [shape = 's32[2]{0}', space=sflag, size = 0x8, scoped, tag = 'scoped memory for tpu_custom_call.1']
    #allocation6 [shape = 'u8[131072]{0}', space=vmem, size = 0x20000, scoped, tag = 'output window, operand 0']
    %6 = vsyncpa [#allocation4], 0
    %s7 = scalar_lea.sflag [#allocation4], 1
    %8 = vsyncpa %s7, 0
    %9 = vsyncpa [#allocation5], 0
    %s10 = scalar_lea.sflag [#allocation5], 1
    %11 = vsyncpa %s10, 0
    loop: start=0, step=1, limit=4
    $region2: #{tpu_custom_call.1} parent=1 // loop_pre_header
      _
    $region3: #{tpu_custom_call.1} parent=1 // loop_header
      %s13 = sphi 0, %s17
      %p14 = scmp.ge.s32.totalorder %s13, 4
      %s20 = sphi 0, %s39
      %s21 = sphi 0, %s35
      %s22 = sphi 0, %s31
      %s23 = sphi 0, %s20
      %s24 = sphi 0, %s21
      %s25 = sphi 0, %s22
      %s26 = sphi 0, %s23
      %s27 = sphi 0, %s24
      %s28 = sphi 0, %s25
      %s44 = sphi 0, %s46
      %s47 = sphi 0, %s44
      %s48 = sphi 0, %s47
      %s64 = sphi 0, %s48
      %s76 = sphi 0, %s78
      %s79 = sphi 0, %s76
      %s80 = sphi 0, %s79
      %s96 = sphi 0, %s80
    $region4: #{tpu_custom_call.1} parent=1 // loop_header_branch
      %16 = sbr.rel (%p14) target = $region8
    $region5: #{tpu_custom_call.1} parent=1 // loop_body
      %s18 = ssub.s32 %s13, 1
      %s19 = ssub.s32 %s13, 2
      %s29 = sadd.s32 1, %s22
      %p30 = scmp.ge.s32.totalorder %s29, 1
      %s31 = scalar_select %p30, 0, %s29
      %s32 = sadd.s32 1, %s21
      %s33 = scalar_select %p30, %s32, %s21
      %p34 = scmp.ge.s32.totalorder %s33, 1
      %s35 = scalar_select %p34, 0, %s33
      %s36 = sadd.s32 1, %s20
      %s37 = scalar_select %p34, %s36, %s20
      %p38 = scmp.ge.s32.totalorder %s37, 2
      %s39 = scalar_select %p38, 0, %s37
      %s40 = ssub.s32 %s20, %s39
      %s41 = ssub.s32 %s21, %s35
      %s42 = sor.u32 %s40, %s41
      %p43 = scmp.eq.s32.totalorder %s42, 0
      %s45 = sadd.s32 %s44, 1
      %s46 = scalar_select %p43, %s44, %s45
      %p49 = pneg %p43
      %p50 = scmp.eq.s32.totalorder %s13, 1
      %p51 = por %p49, %p50
      %p52 = scmp.ne.s32.totalorder %s44, %s47
      %p53 = scmp.eq.s32.totalorder %s13, 0
      %p54 = por %p52, %p53
      %p55 = scmp.ne.s32.totalorder %s44, %s47
      %p56 = scmp.eq.s32.totalorder %s18, 1
      %p57 = por %p55, %p56
      %p58 = scmp.ne.s32.totalorder %s47, %s48
      %p59 = scmp.eq.s32.totalorder %s18, 0
      %p60 = por %p58, %p59
      %p61 = scmp.ne.s32.totalorder %s47, %s48
      %p62 = scmp.eq.s32.totalorder %s19, 1
      %p63 = por %p61, %p62
      %p65 = scmp.ne.s32.totalorder %s48, %s64
      %p66 = scmp.eq.s32.totalorder %s19, 0
      %p67 = por %p65, %p66
      %s68 = ssub.s32 0, %s22
      %s69 = ssub.s32 0, %s31
      %s70 = ssub.s32 %s20, %s39
      %s71 = ssub.s32 %s68, %s69
      %s72 = sor.u32 %s70, %s71
      %s73 = ssub.s32 %s21, %s35
      %s74 = sor.u32 %s72, %s73
      %p75 = scmp.eq.s32.totalorder %s74, 0
      %s77 = sadd.s32 %s76, 1
      %s78 = scalar_select %p75, %s76, %s77
      %p81 = pneg %p75
      %p82 = scmp.eq.s32.totalorder %s13, 1
      %p83 = por %p81, %p82
      %p84 = scmp.ne.s32.totalorder %s76, %s79
      %p85 = scmp.eq.s32.totalorder %s13, 0
      %p86 = por %p84, %p85
      %p87 = scmp.ne.s32.totalorder %s76, %s79
      %p88 = scmp.eq.s32.totalorder %s18, 1
      %p89 = por %p87, %p88
      %p90 = scmp.ne.s32.totalorder %s79, %s80
      %p91 = scmp.eq.s32.totalorder %s18, 0
      %p92 = por %p90, %p91
      %p93 = scmp.ne.s32.totalorder %s79, %s80
      %p94 = scmp.eq.s32.totalorder %s19, 1
      %p95 = por %p93, %p94
      %p97 = scmp.ne.s32.totalorder %s80, %s96
      %p98 = scmp.eq.s32.totalorder %s19, 0
      %p99 = por %p97, %p98
      %p100 = scmp.le.s32.totalorder 1, %s13
      %p101 = scmp.lt.s32.totalorder %s13, 3
      %p102 = pnand %p100, %p101
      %p103 = pneg %p102
      // Predicated region
      $region9: #{tpu_custom_call.1} parent=5 // pred_check
        _
      $region10: #{tpu_custom_call.1} parent=5 // pred_check_branch
        %105 = sbr.rel (%p102) target = $region12
      $region11: #{tpu_custom_call.1} parent=5 // pred_region
        %s106 = ssub.s32 %s13, 1
      $region12: #{tpu_custom_call.1} parent=5 // pred_fallthru
        _
      %p107 = scmp.lt.s32.totalorder %s13, 2
      // Predicated region
      $region13: #{tpu_custom_call.1} parent=5 // pred_check
        %p108 = pneg %p107
      $region14: #{tpu_custom_call.1} parent=5 // pred_check_branch
        %110 = sbr.rel (%p108) target = $region16
      $region15: #{tpu_custom_call.1} parent=5 // pred_region
        // Predicated region
        $region17: #{tpu_custom_call.1} parent=15 // pred_check
          %p111 = pneg %p54
        $region18: #{tpu_custom_call.1} parent=15 // pred_check_branch
          %113 = sbr.rel (%p111) target = $region20
        $region19: #{tpu_custom_call.1} parent=15 // pred_region
          %s114 = sand.u32 %s44, 1
          %s115 = scalar_lea.sflag [#allocation4], %s114
          %s116 = sand.u32 %s44, 1
          %s117 = smul.addr %s116, 16
          %s118 = scalar_lea.vmem [#allocation3], %s117
          %s120 = ssub.s32 256, 256
          %121 = vsyncadd %s115, %s120
          %s122 = smul.addr %s20, 2
          %s123 = sadd.s32 %s21, %s122
          %s124 = smul.addr %s123, 128
          %s125 = scalar_lea.hbm %s0, %s124
          %s126 = sshll.u32 %s118, 4
          %s127 = int_to_ptr.vmem [resolvable:$true] %s126
          %132 = dma.hbm_to_vmem [thread:$0]  %s125, 256, %s127, %s115, 128, 128, 8
        $region20: #{tpu_custom_call.1} parent=15 // pred_fallthru
          _
      $region16: #{tpu_custom_call.1} parent=5 // pred_fallthru
        _
      %p133 = scmp.le.s32.totalorder 1, %s13
      %p134 = scmp.lt.s32.totalorder %s13, 3
      %p135 = pnand %p133, %p134
      %p136 = pneg %p135
      // Predicated region
      $region21: #{tpu_custom_call.1} parent=5 // pred_check
        _
      $region22: #{tpu_custom_call.1} parent=5 // pred_check_branch
        %138 = sbr.rel (%p135) target = $region24
      $region23: #{tpu_custom_call.1} parent=5 // pred_region
        %s139 = ssub.s32 %s13, 1
        %s140 = sand.u32 %s47, 1
        %s141 = scalar_lea.sflag [#allocation4], %s140
        %s142 = sand.u32 %s47, 1
        %s143 = smul.addr %s142, 16
        %s144 = scalar_lea.vmem [#allocation3], %s143
        // Predicated region
        $region25: #{tpu_custom_call.1} parent=23 // pred_check
          %p145 = pneg %p60
        $region26: #{tpu_custom_call.1} parent=23 // pred_check_branch
          %147 = sbr.rel (%p145) target = $region28
        $region27: #{tpu_custom_call.1} parent=23 // pred_region
          %148 = dma.done %s141, 256
        $region28: #{tpu_custom_call.1} parent=23 // pred_fallthru
          _
        %s149 = sand.u32 %s47, 1
        %s150 = scalar_lea.sflag [#allocation4], %s149
        %s151 = sand.u32 %s47, 1
        %s152 = smul.addr %s151, 16
        %s153 = scalar_lea.vmem [#allocation3], %s152
        %p154 = pneg %p60
        %p155 = pneg %p57
        %p156 = pneg %p92
        %p157 = pneg %p89
        %s158 = sand.u32 %s79, 1
        %s159 = scalar_lea.sflag [#allocation5], %s158
        %s160 = sand.u32 %s79, 1
        %s161 = smul.addr %s160, 128
        %s162 = scalar_lea.vmem [#allocation6], %s161
        %s163 = ssub.s32 0, %s25
        %s164 = smul.u32 16, %s163
        %p165 = scmp.eq.s32.totalorder %s25, 0
        // Predicated region
        $region29: #{tpu_custom_call.1} parent=23 // pred_check
          %p166 = pneg %p165
        $region30: #{tpu_custom_call.1} parent=23 // pred_check_branch
          %168 = sbr.rel (%p166) target = $region32
        $region31: #{tpu_custom_call.1} parent=23 // pred_region
          %vm169 = vcmask 261120
          %170 = vst.msk [vmem:[#allocation2] sm:$0xff] %vm169, -inf
          %171 = vst.msk [vmem:[#allocation2 + $0x8] sm:$0xff] %vm169, -inf
        $region32: #{tpu_custom_call.1} parent=23 // pred_fallthru
          _
        %s172 = ssub.s32 0, %s25
        %s173 = smul.u32 %s172, 16
        %v174 = vlaneseq
        %v175 = vshrl.u32 %v174, 7
        %v176 = vadd.s32 %v175, 8
        loop: start=0, step=1, limit=16
        $region33: #{tpu_custom_call.1} parent=23 // loop_pre_header
          _
        $region34: #{tpu_custom_call.1} parent=23 // loop_header
          %s178 = sphi 0, %s182
          %p179 = scmp.ge.s32.totalorder %s178, 16
        $region35: #{tpu_custom_call.1} parent=23 // loop_header_branch
          %181 = sbr.rel (%p179) target = $region39
        $region36: #{tpu_custom_call.1} parent=23 // loop_body
          %s183 = ssub.s32 15, %s178
          %s184 = sadd.s32 %s173, %s183
          %s185 = scalar_lea.vmem %s144, %s184 [#allocation3]
          %v186 = vld [vmem:[%s185] sm:$0x1]
          %v187 = vstv %s184
          %vm188 = vcmp.gt.s32.totalorder %v175, %v187
          %vm189 = vcmp.gt.s32.totalorder %v176, %v187
          %v190 = vld [vmem:[#allocation2] sm:$0xff]
          %v191 = vld [vmem:[#allocation2 + $0x8] sm:$0xff]
          %v192 = vsel %vm188, 1, 0
          %v193 = vsel %vm189, 1, 0
          %vm194 = vcmp.eq.s32.totalorder %v192, 1
          %vm195 = vcmp.eq.s32.totalorder %v193, 1
          %v196 = vsel %vm194, %v190, -inf
          %v197 = vsel %vm195, %v191, -inf
          %v198 = vlaneseq
          %v199 = vshrl.u32 %v198, 7
          %v200 = vsub.s32 0, %v199
          %v201 = vrot.slane %v186, %v200
          %v202 = vmax.f32 %v196, %v201
          %v203 = vmax.f32 %v197, %v201
          %vm204 = vcmask 261120
          %205 = vst.msk [vmem:[#allocation2] sm:$0xff] %vm204, %v202
          %206 = vst.msk [vmem:[#allocation2 + $0x8] sm:$0xff] %vm204, %v203
          %vm207 = vcmp.ge.s32.totalorder %v175, %v187
          %vm208 = vcmp.ge.s32.totalorder %v176, %v187
          %v209 = vsel %vm207, 1, 0
          %v210 = vsel %vm208, 1, 0
          %vm211 = vcmp.eq.s32.totalorder %v209, 1
          %vm212 = vcmp.eq.s32.totalorder %v210, 1
          %v213 = vsel %vm211, %v202, 0.0
          %v214 = vsel %vm212, %v203, 0.0
          %v215 = vpack.c.bf16 %v214, %v213
          %v217 = vunpack.c.l.b16 %v215
          %v218 = vunpack.c.h.b16 %v215
          %v219 = vpack.c.b16 %v217, %v217
          %v220 = vpack.c.b16 %v218, %v218
          %s223 = smul.u32 %s183, 2
          %s224 = smul.addr %s223, 4
          %s225 = scalar_lea.vmem %s162, %s224 [#allocation6]
          %vm226 = vcmask 257024
          %227 = vst.msk [vmem:[%s225] sm:$0xf] %vm226, %v219
          %228 = vst.msk [vmem:[%s225 + $0x4] sm:$0xf] %vm226, %v220
        $region37: #{tpu_custom_call.1} parent=23 // loop_footer
          %s182 = sadd.s32 1, %s178
        $region38: #{tpu_custom_call.1} parent=23 // loop_footer_branch
          %177 = sbr.rel target = $region34
        $region39: #{tpu_custom_call.1} parent=23 // loop_exit
          _
        %s229 = sand.u32 %s79, 1
        %s230 = scalar_lea.sflag [#allocation5], %s229
        %s231 = sand.u32 %s79, 1
        %s232 = smul.addr %s231, 128
        %s233 = scalar_lea.vmem [#allocation6], %s232
        // Predicated region
        $region40: #{tpu_custom_call.1} parent=23 // pred_check
          %p234 = pneg %p89
        $region41: #{tpu_custom_call.1} parent=23 // pred_check_branch
          %236 = sbr.rel (%p234) target = $region43
        $region42: #{tpu_custom_call.1} parent=23 // pred_region
          %s237 = ssub.s32 0, %s25
          %s238 = smul.u32 16, %s237
          %s240 = ssub.s32 2048, 2048
          %241 = vsyncadd %s230, %s240
          %s242 = smul.addr %s238, 2
          %s243 = sadd.s32 %s24, %s242
          %s244 = smul.addr %s23, 32
          %s245 = sadd.s32 %s243, %s244
          %s246 = smul.addr %s245, 64
          %s247 = scalar_lea.hbm %s1, %s246
          %s248 = sshll.u32 %s233, 4
          %s249 = int_to_ptr.vmem [resolvable:$true] %s248
          %254 = dma.vmem_to_hbm [thread:$0]  %s249, 2048, %s247, %s230, 64, 64, 4
        $region43: #{tpu_custom_call.1} parent=23 // pred_fallthru
          _
      $region24: #{tpu_custom_call.1} parent=5 // pred_fallthru
        _
      %p255 = scmp.le.s32.totalorder 2, %s13
      // Predicated region
      $region44: #{tpu_custom_call.1} parent=5 // pred_check
        %p256 = pneg %p255
      $region45: #{tpu_custom_call.1} parent=5 // pred_check_branch
        %258 = sbr.rel (%p256) target = $region47
      $region46: #{tpu_custom_call.1} parent=5 // pred_region
        %s259 = ssub.s32 %s13, 2
        // Predicated region
        $region48: #{tpu_custom_call.1} parent=46 // pred_check
          %p260 = pneg %p95
        $region49: #{tpu_custom_call.1} parent=46 // pred_check_branch
          %262 = sbr.rel (%p260) target = $region51
        $region50: #{tpu_custom_call.1} parent=46 // pred_region
          %s263 = sand.u32 %s80, 1
          %s264 = scalar_lea.sflag [#allocation5], %s263
          %s265 = sand.u32 %s80, 1
          %s266 = smul.addr %s265, 128
          %s267 = scalar_lea.vmem [#allocation6], %s266
          %268 = dma.done %s264, 2048
        $region51: #{tpu_custom_call.1} parent=46 // pred_fallthru
          _
      $region47: #{tpu_custom_call.1} parent=5 // pred_fallthru
        _
    $region6: #{tpu_custom_call.1} parent=1 // loop_footer
      %s17 = sadd.s32 1, %s13
    $region7: #{tpu_custom_call.1} parent=1 // loop_footer_branch
      %12 = sbr.rel target = $region3
    $region8: #{tpu_custom_call.1} parent=1 // loop_exit
      _
    %269 = vsyncpa [#allocation4], 1
    %s270 = scalar_lea.sflag [#allocation4], 1
    %271 = vsyncpa %s270, 1
    %272 = vsyncpa [#allocation5], 1
    %s273 = scalar_lea.sflag [#allocation5], 1
    %274 = vsyncpa %s273, 1

</llo_original>
